<compile_context>
chip_gen: v5e
topology: v5e:2x2
jax: 0.10.0
libtpu: 0.0.40
codegen_flags: <defaults>
</compile_context>

<pallas_src>
import functools

import jax
import jax.numpy as jnp
from jax.experimental import pallas as pl
from jax.experimental.pallas import tpu as pltpu

LANE = 128  # hidden activations are kept lane-dense (32 -> 128, padded once at init)


def _round_up(n, m):
    return pl.cdiv(n, m) * m


def _pad2d(a, shape):
    return jnp.pad(a, [(0, s - d) for d, s in zip(a.shape, shape)])


def dqn_kernel(x_ref, w1_ref, w2_ref, w3_ref, b_ref, o_ref):
    """One batch tile of the 3-layer MLP.

    x_ref : (TB, d_in)       logical-width activations (streamed per tile)
    w1_ref: (d_in, H_p)      H_p = hidden padded to 128 (zero cols)
    w2_ref: (H_p, H_p)
    w3_ref: (H_p, d_out)     logical output width (3)
    b_ref : (3, H_p)         row0=b1, row1=b2, row2[:d_out]=b3 (zero-padded)
    o_ref : (TB, d_out)
    """
    d_out = w3_ref.shape[1]

    x = x_ref[...]  # already f32, no cast

    h1 = jnp.dot(x, w1_ref[...], preferred_element_type=jnp.float32)
    h1 = jnp.maximum(h1 + b_ref[0:1, :], 0.0)

    h2 = jnp.dot(h1, w2_ref[...], preferred_element_type=jnp.float32)
    h2 = jnp.maximum(h2 + b_ref[1:2, :], 0.0)

    out = jnp.dot(h2, w3_ref[...], preferred_element_type=jnp.float32)
    o_ref[...] = (out + b_ref[2:3, :d_out]).astype(o_ref.dtype)


def prepare_params(params):
    """Pad / pack weights ONCE (call at init, reuse across forward calls).

    Zero padding of the hidden dim is exact: padded w1 columns and b1/b2
    entries are zero, so the padded hidden lanes stay 0 through the ReLUs and
    the padded w2/w3 rows contribute nothing.
    """
    w1, b1, w2, b2, w3, b3 = params
    d_in, hidden = w1.shape
    d_out = w3.shape[1]
    h_p = int(_round_up(hidden, LANE))

    w1_p = _pad2d(jnp.asarray(w1, jnp.float32), (d_in, h_p))   # input dim stays logical
    w2_p = _pad2d(jnp.asarray(w2, jnp.float32), (h_p, h_p))
    w3_p = _pad2d(jnp.asarray(w3, jnp.float32), (h_p, d_out))  # output dim stays logical
    b_pack = jnp.concatenate(
        [
            _pad2d(jnp.asarray(b1, jnp.float32).reshape(1, -1), (1, h_p)),
            _pad2d(jnp.asarray(b2, jnp.float32).reshape(1, -1), (1, h_p)),
            _pad2d(jnp.asarray(b3, jnp.float32).reshape(1, -1), (1, h_p)),
        ],
        axis=0,
    )  # (3, h_p)
    return (w1_p, w2_p, w3_p, b_pack)


def _num_tensorcores():
    """2 TensorCores per chip on v7x, 1 on v5e/v6e (best-effort detection)."""
    try:
        kind = jax.devices()[0].device_kind.lower()
        return 2 if "v7" in kind else 1
    except Exception:  # pragma: no cover - conservative fallback
        return 1


def _choose_block_b(batch, num_tc, cap=1024):
    """Adaptive batch tile: multiple of 8 (f32 sublane), >=num_tc grid steps,
    capped so huge batches still pipeline with modest VMEM."""
    b8 = max(8, int(_round_up(batch, 8)))
    per_core = int(_round_up(pl.cdiv(b8, num_tc), 8)) if num_tc > 1 else b8
    return int(min(per_core, cap))


@functools.partial(jax.jit, static_argnames=("block_b",))
def _dqn_forward_impl(x, w1_p, w2_p, w3_p, b_pack, *, block_b):
    B, d_in = x.shape
    d_out = w3_p.shape[1]

    b_pad = int(_round_up(B, block_b))
    if b_pad != B:
        x = jnp.pad(x, ((0, b_pad - B), (0, 0)))  # only the batch dim, only if needed
    grid = (b_pad // block_b,)

    # Resident operands: constant index_map -> DMA'd once, stay in VMEM.
    resident = lambda a: pl.BlockSpec(a.shape, lambda i: (0, 0))
    # NOTE: pipeline_mode=pl.Buffered(1) on the resident specs would drop their
    # unused second buffer; skipped (pure hygiene -- VMEM headroom is huge).

    out = pl.pallas_call(
        dqn_kernel,
        out_shape=jax.ShapeDtypeStruct((b_pad, d_out), jnp.float32),
        grid=grid,
        in_specs=[
            pl.BlockSpec((block_b, d_in), lambda i: (i, 0)),  # stream x at logical width
            resident(w1_p),
            resident(w2_p),
            resident(w3_p),
            resident(b_pack),
        ],
        out_specs=pl.BlockSpec((block_b, d_out), lambda i: (i, 0)),  # un-padded output
        compiler_params=pltpu.CompilerParams(
            # Batch tiles are independent -> shards across the 2 TCs on v7x.
            dimension_semantics=("parallel",),
        ),
    )(x, w1_p, w2_p, w3_p, b_pack)

    return out[:B] if b_pad != B else out


def dqn_forward(x, packed_params, *, block_b=None):
    """y = relu(x@W1+b1) -> relu(.@W2+b2) -> .@W3+b3 (matches PyTorch DQN.forward)."""
    if block_b is None:
        block_b = _choose_block_b(x.shape[0], _num_tensorcores())
    w1_p, w2_p, w3_p, b_pack = packed_params
    return _dqn_forward_impl(
        x.astype(jnp.float32), w1_p, w2_p, w3_p, b_pack, block_b=block_b
    )


def init_params(key, input_size, hidden_size, output_size):
    # Deterministic synthetic init (Kaiming-uniform-like bounds, like nn.Linear default).
    ks = jax.random.split(key, 6)

    def linear(kw, kb, fan_in, fan_out):
        bound = 1.0 / jnp.sqrt(fan_in)
        w = jax.random.uniform(kw, (fan_in, fan_out), jnp.float32, -bound, bound)
        b = jax.random.uniform(kb, (1, fan_out), jnp.float32, -bound, bound)
        return w, b

    w1, b1 = linear(ks[0], ks[1], input_size, hidden_size)
    w2, b2 = linear(ks[2], ks[3], hidden_size, hidden_size)
    w3, b3 = linear(ks[4], ks[5], hidden_size, output_size)
    return (w1, b1, w2, b2, w3, b3)


if __name__ == "__main__":
    # Snake-DQN shapes: 11 state features, hidden 32, 3 actions.
    batch, input_size, hidden_size, output_size = 256, 11, 32, 3

    key = jax.random.PRNGKey(0)
    kx, kp = jax.random.split(key)
    x = jax.random.normal(kx, (batch, input_size), dtype=jnp.float32)
    params = init_params(kp, input_size, hidden_size, output_size)

    # One-time weight pack (init-time cost, amortized across all forward calls).
    packed = jax.block_until_ready(prepare_params(params))

    out = dqn_forward(x, packed)
    out = jax.block_until_ready(out)

    # Pure-JAX reference check.
    w1, b1, w2, b2, w3, b3 = params
    h = jnp.maximum(x @ w1 + b1, 0.0)
    h = jnp.maximum(h @ w2 + b2, 0.0)
    ref = h @ w3 + b3
    assert out.shape == (batch, output_size)
    assert jnp.allclose(out, ref, atol=1e-5, rtol=1e-5)

    # Small / online action-selection batch (exercises adaptive 8-row padding).
    x_small = x[:5]
    out_small = jax.block_until_ready(dqn_forward(x_small, packed))
    assert out_small.shape == (5, output_size)
    assert jnp.allclose(out_small, ref[:5], atol=1e-5, rtol=1e-5)

    print("KERNEL_OK")
</pallas_src>

<mosaic_0001>
module attributes {stable_mosaic.version = 11 : i64} {
  func.func @dqn_kernel(%arg0: i32, %arg1: memref<256x11xf32, #tpu.memory_space<vmem>>, %arg2: memref<11x128xf32, #tpu.memory_space<vmem>>, %arg3: memref<128x128xf32, #tpu.memory_space<vmem>>, %arg4: memref<128x3xf32, #tpu.memory_space<vmem>>, %arg5: memref<3x128xf32, #tpu.memory_space<vmem>>, %arg6: memref<256x3xf32, #tpu.memory_space<vmem>>) attributes {dimension_semantics = [#tpu.dimension_semantics<parallel>], iteration_bounds = array<i64: 1>, scalar_prefetch = 0 : i64, scratch_operands = 0 : i64, tpu.core_type = #tpu.core_type<tc>, window_params = [{transform_indices = @transform_0, window_bounds = array<i64: 256, 11>}, {pipeline_mode = #tpu.pipeline_mode<synchronous>, transform_indices = @transform_1, window_bounds = array<i64: 11, 128>}, {pipeline_mode = #tpu.pipeline_mode<synchronous>, transform_indices = @transform_2, window_bounds = array<i64: 128, 128>}, {pipeline_mode = #tpu.pipeline_mode<synchronous>, transform_indices = @transform_3, window_bounds = array<i64: 128, 3>}, {pipeline_mode = #tpu.pipeline_mode<synchronous>, transform_indices = @transform_4, window_bounds = array<i64: 3, 128>}, {transform_indices = @transform_5, window_bounds = array<i64: 256, 3>}]} {
    %c0 = arith.constant 0 : index
    %c0_0 = arith.constant 0 : index
    %0 = vector.load %arg1[%c0, %c0_0] : memref<256x11xf32, #tpu.memory_space<vmem>>, vector<256x11xf32>
    %c0_1 = arith.constant 0 : index
    %c0_2 = arith.constant 0 : index
    %1 = vector.load %arg2[%c0_1, %c0_2] : memref<11x128xf32, #tpu.memory_space<vmem>>, vector<11x128xf32>
    %cst = arith.constant dense<0.000000e+00> : vector<256x128xf32>
    %2 = tpu.matmul %0, %1, %cst {dimension_numbers = #tpu.dot_dimension_numbers<[1], [0], [0], [1], [0, 0, 1, 1], [], []>} : vector<256x11xf32>, vector<11x128xf32>, vector<256x128xf32> -> vector<256x128xf32>
    %c0_3 = arith.constant 0 : index
    %c0_4 = arith.constant 0 : index
    %3 = vector.load %arg5[%c0_3, %c0_4] : memref<3x128xf32, #tpu.memory_space<vmem>>, vector<1x128xf32>
    %4 = vector.broadcast %3 : vector<1x128xf32> to vector<256x128xf32>
    %5 = arith.addf %2, %4 : vector<256x128xf32>
    %cst_5 = arith.constant 0.000000e+00 : f32
    %6 = vector.broadcast %cst_5 : f32 to vector<256x128xf32>
    %7 = arith.maximumf %5, %6 : vector<256x128xf32>
    %c0_6 = arith.constant 0 : index
    %c0_7 = arith.constant 0 : index
    %8 = vector.load %arg3[%c0_6, %c0_7] : memref<128x128xf32, #tpu.memory_space<vmem>>, vector<128x128xf32>
    %cst_8 = arith.constant dense<0.000000e+00> : vector<256x128xf32>
    %9 = tpu.matmul %7, %8, %cst_8 {dimension_numbers = #tpu.dot_dimension_numbers<[1], [0], [0], [1], [0, 0, 1, 1], [], []>} : vector<256x128xf32>, vector<128x128xf32>, vector<256x128xf32> -> vector<256x128xf32>
    %c1 = arith.constant 1 : index
    %c0_9 = arith.constant 0 : index
    %10 = vector.load %arg5[%c1, %c0_9] : memref<3x128xf32, #tpu.memory_space<vmem>>, vector<1x128xf32>
    %11 = vector.broadcast %10 : vector<1x128xf32> to vector<256x128xf32>
    %12 = arith.addf %9, %11 : vector<256x128xf32>
    %cst_10 = arith.constant 0.000000e+00 : f32
    %13 = vector.broadcast %cst_10 : f32 to vector<256x128xf32>
    %14 = arith.maximumf %12, %13 : vector<256x128xf32>
    %c0_11 = arith.constant 0 : index
    %c0_12 = arith.constant 0 : index
    %15 = vector.load %arg4[%c0_11, %c0_12] : memref<128x3xf32, #tpu.memory_space<vmem>>, vector<128x3xf32>
    %cst_13 = arith.constant dense<0.000000e+00> : vector<256x3xf32>
    %16 = tpu.matmul %14, %15, %cst_13 {dimension_numbers = #tpu.dot_dimension_numbers<[1], [0], [0], [1], [0, 0, 1, 1], [], []>} : vector<256x128xf32>, vector<128x3xf32>, vector<256x3xf32> -> vector<256x3xf32>
    %c2 = arith.constant 2 : index
    %c0_14 = arith.constant 0 : index
    %17 = vector.load %arg5[%c2, %c0_14] : memref<3x128xf32, #tpu.memory_space<vmem>>, vector<1x3xf32>
    %18 = vector.broadcast %17 : vector<1x3xf32> to vector<256x3xf32>
    %19 = arith.addf %16, %18 : vector<256x3xf32>
    %c0_15 = arith.constant 0 : index
    %c0_16 = arith.constant 0 : index
    %20 = vector.load %arg6[%c0_15, %c0_16] : memref<256x3xf32, #tpu.memory_space<vmem>>, vector<256x3xf32>
    tpu.vector_store %arg6[%c0_15, %c0_16], %19 {strides = array<i32>} : memref<256x3xf32, #tpu.memory_space<vmem>>, vector<256x3xf32>,
    return
  }
  func.func @transform_0(%arg0: i32) -> (i32, i32) {
    %c0_i32 = arith.constant 0 : i32
    %c0_i32_0 = arith.constant 0 : i32
    return %arg0, %c0_i32 : i32, i32
  }
  func.func @transform_1(%arg0: i32) -> (i32, i32) {
    %c0_i32 = arith.constant 0 : i32
    %c0_i32_0 = arith.constant 0 : i32
    %c0_i32_1 = arith.constant 0 : i32
    return %c0_i32, %c0_i32_0 : i32, i32
  }
  func.func @transform_2(%arg0: i32) -> (i32, i32) {
    %c0_i32 = arith.constant 0 : i32
    %c0_i32_0 = arith.constant 0 : i32
    %c0_i32_1 = arith.constant 0 : i32
    return %c0_i32, %c0_i32_0 : i32, i32
  }
  func.func @transform_3(%arg0: i32) -> (i32, i32) {
    %c0_i32 = arith.constant 0 : i32
    %c0_i32_0 = arith.constant 0 : i32
    %c0_i32_1 = arith.constant 0 : i32
    return %c0_i32, %c0_i32_0 : i32, i32
  }
  func.func @transform_4(%arg0: i32) -> (i32, i32) {
    %c0_i32 = arith.constant 0 : i32
    %c0_i32_0 = arith.constant 0 : i32
    %c0_i32_1 = arith.constant 0 : i32
    return %c0_i32, %c0_i32_0 : i32, i32
  }
  func.func @transform_5(%arg0: i32) -> (i32, i32) {
    %c0_i32 = arith.constant 0 : i32
    %c0_i32_0 = arith.constant 0 : i32
    return %arg0, %c0_i32 : i32, i32
  }
}

</mosaic_0001>

<llo_original>
// kernel: _dqn_forward_impl.1
$region0: #{_dqn_forward_impl.1}
  #allocation0 [shape = 'u32[]', space=smem, size = 0x4, offset = 0x4, fixed_abs, tag = 'smem constant byte address 0x4 - core index']
  #allocation1 [shape = 'u32[72,128]{1,0:T(1,128)}', space=vmem, size = 0x9000, scoped, tag = 'internal scratch']
  %s0 = inlined_call_operand.vmem [shape: f32[256,11], index: 0, kind: input, shape index: {}]
  %s1 = inlined_call_operand.vmem [shape: f32[11,128], index: 1, kind: input, shape index: {}]
  %s2 = inlined_call_operand.vmem [shape: f32[128,128], index: 2, kind: input, shape index: {}]
  %s3 = inlined_call_operand.vmem [shape: f32[128,3], index: 3, kind: input, shape index: {}]
  %s4 = inlined_call_operand.vmem [shape: f32[3,128], index: 4, kind: input, shape index: {}]
  %s5 = inlined_call_operand.vmem [shape: f32[256,3], index: 5, kind: output, shape index: {}]
  %s6 = sld [smem:[#allocation0]]
  $region30: #{_dqn_forward_impl.1} parent=0
    _
  %s8 = ssub.s32 1, %s6
  %s9 = scalar_select 0, %s8, %s6
  // Predicated region
  $region2: #{_dqn_forward_impl.1} parent=0 // pred_check
    _
  $region3: #{_dqn_forward_impl.1} parent=0 // pred_check_branch
    %11 = sbr.rel (0) target = $region5
  $region4: #{_dqn_forward_impl.1} parent=0 // pred_region
    _
  $region5: #{_dqn_forward_impl.1} parent=0 // pred_fallthru
    _
  // Predicated region
  $region6: #{_dqn_forward_impl.1} parent=0 // pred_check
    _
  $region7: #{_dqn_forward_impl.1} parent=0 // pred_check_branch
    %13 = sbr.rel (0) target = $region9
  $region8: #{_dqn_forward_impl.1} parent=0 // pred_region
    _
  $region9: #{_dqn_forward_impl.1} parent=0 // pred_fallthru
    _
  // Predicated region
  $region10: #{_dqn_forward_impl.1} parent=0 // pred_check
    _
  $region11: #{_dqn_forward_impl.1} parent=0 // pred_check_branch
    %15 = sbr.rel (0) target = $region13
  $region12: #{_dqn_forward_impl.1} parent=0 // pred_region
    _
  $region13: #{_dqn_forward_impl.1} parent=0 // pred_fallthru
    _
  // Predicated region
  $region14: #{_dqn_forward_impl.1} parent=0 // pred_check
    _
  $region15: #{_dqn_forward_impl.1} parent=0 // pred_check_branch
    %17 = sbr.rel (0) target = $region17
  $region16: #{_dqn_forward_impl.1} parent=0 // pred_region
    _
  $region17: #{_dqn_forward_impl.1} parent=0 // pred_fallthru
    _
  // Predicated region
  $region18: #{_dqn_forward_impl.1} parent=0 // pred_check
    _
  $region19: #{_dqn_forward_impl.1} parent=0 // pred_check_branch
    %19 = sbr.rel (0) target = $region21
  $region20: #{_dqn_forward_impl.1} parent=0 // pred_region
    _
  $region21: #{_dqn_forward_impl.1} parent=0 // pred_fallthru
    _
  %v20 = vld [vmem:[%s0] sm:$0xff]
  %v21 = vld [vmem:[%s0 + $0x8] sm:$0xff]
  %v22 = vld [vmem:[%s0 + $0x10] sm:$0xff]
  %v23 = vld [vmem:[%s0 + $0x18] sm:$0xff]
  %v24 = vld [vmem:[%s0 + $0x20] sm:$0xff]
  %v25 = vld [vmem:[%s0 + $0x28] sm:$0xff]
  %v26 = vld [vmem:[%s0 + $0x30] sm:$0xff]
  %v27 = vld [vmem:[%s0 + $0x38] sm:$0xff]
  %v28 = vld [vmem:[%s0 + $0x40] sm:$0xff]
  %v29 = vld [vmem:[%s0 + $0x48] sm:$0xff]
  %v30 = vld [vmem:[%s0 + $0x50] sm:$0xff]
  %v31 = vld [vmem:[%s0 + $0x58] sm:$0xff]
  %v32 = vld [vmem:[%s0 + $0x60] sm:$0xff]
  %v33 = vld [vmem:[%s0 + $0x68] sm:$0xff]
  %v34 = vld [vmem:[%s0 + $0x70] sm:$0xff]
  %v35 = vld [vmem:[%s0 + $0x78] sm:$0xff]
  %v36 = vld [vmem:[%s0 + $0x80] sm:$0xff]
  %v37 = vld [vmem:[%s0 + $0x88] sm:$0xff]
  %v38 = vld [vmem:[%s0 + $0x90] sm:$0xff]
  %v39 = vld [vmem:[%s0 + $0x98] sm:$0xff]
  %v40 = vld [vmem:[%s0 + $0xa0] sm:$0xff]
  %v41 = vld [vmem:[%s0 + $0xa8] sm:$0xff]
  %v42 = vld [vmem:[%s0 + $0xb0] sm:$0xff]
  %v43 = vld [vmem:[%s0 + $0xb8] sm:$0xff]
  %v44 = vld [vmem:[%s0 + $0xc0] sm:$0xff]
  %v45 = vld [vmem:[%s0 + $0xc8] sm:$0xff]
  %v46 = vld [vmem:[%s0 + $0xd0] sm:$0xff]
  %v47 = vld [vmem:[%s0 + $0xd8] sm:$0xff]
  %v48 = vld [vmem:[%s0 + $0xe0] sm:$0xff]
  %v49 = vld [vmem:[%s0 + $0xe8] sm:$0xff]
  %v50 = vld [vmem:[%s0 + $0xf0] sm:$0xff]
  %v51 = vld [vmem:[%s0 + $0xf8] sm:$0xff]
  %v52 = vld [vmem:[%s1] sm:$0xff]
  %v53 = vld [vmem:[%s1 + $0x8] sm:$0x7]
  %v54 = vld [vmem:[%s4] sm:$0x1]
  %v55 = vperm.slane %v54, 0
  %vm56 = vcmask 89088
  %v58 = vsel %vm56, %v20, 0
  %v61 = vsel %vm56, %v21, 0
  %v64 = vsel %vm56, %v22, 0
  %v67 = vsel %vm56, %v23, 0
  %v70 = vsel %vm56, %v24, 0
  %v73 = vsel %vm56, %v25, 0
  %v76 = vsel %vm56, %v26, 0
  %v79 = vsel %vm56, %v27, 0
  %v82 = vsel %vm56, %v28, 0
  %v85 = vsel %vm56, %v29, 0
  %v88 = vsel %vm56, %v30, 0
  %v91 = vsel %vm56, %v31, 0
  %v94 = vsel %vm56, %v32, 0
  %v97 = vsel %vm56, %v33, 0
  %v100 = vsel %vm56, %v34, 0
  %v103 = vsel %vm56, %v35, 0
  %v106 = vsel %vm56, %v36, 0
  %v109 = vsel %vm56, %v37, 0
  %v112 = vsel %vm56, %v38, 0
  %v115 = vsel %vm56, %v39, 0
  %v118 = vsel %vm56, %v40, 0
  %v121 = vsel %vm56, %v41, 0
  %v124 = vsel %vm56, %v42, 0
  %v127 = vsel %vm56, %v43, 0
  %v130 = vsel %vm56, %v44, 0
  %v133 = vsel %vm56, %v45, 0
  %v136 = vsel %vm56, %v46, 0
  %v139 = vsel %vm56, %v47, 0
  %v142 = vsel %vm56, %v48, 0
  %v145 = vsel %vm56, %v49, 0
  %v148 = vsel %vm56, %v50, 0
  %v151 = vsel %vm56, %v51, 0
  %vm153 = vcmask 1042432
  %v155 = vsel %vm153, %v53, 0
  %157 = vmatpush.msra.mxu0 0.0
  %158 = vmatpush.msra.mxu0 0.0
  %159 = vmatpush.msra.mxu0 0.0
  %160 = vmatpush.msra.mxu0 0.0
  %161 = vmatpush.msra.mxu0 0.0
  %162 = vmatpush.msra.mxu0 0.0
  %163 = vmatpush.msra.mxu0 0.0
  %164 = vmatpush.msra.mxu0 0.0
  %165 = vmatpush.msra.mxu0 0.0
  %166 = vmatpush.msra.mxu0 0.0
  %167 = vmatpush.msra.mxu0 0.0
  %168 = vmatpush.msra.mxu0 0.0
  %169 = vmatpush.msra.mxu0 0.0
  %170 = vmatpush.msra.mxu0 0.0
  %171 = vmatpush.msra.mxu0 %v155
  %172 = vmatpush.msra.mxu0 %v52
  %173 = vmatmul.f32.gmra.mxu0 %v58
  %v174 = vpop.f32.mrf.mxu0
  %v175 = vadd.f32 %v55, %v174
  %176 = vmatmul.f32.gmra.mxu0 %v61
  %v177 = vpop.f32.mrf.mxu0
  %v178 = vadd.f32 %v55, %v177
  %179 = vmatmul.f32.gmra.mxu0 %v64
  %v180 = vpop.f32.mrf.mxu0
  %v181 = vadd.f32 %v55, %v180
  %182 = vmatmul.f32.gmra.mxu0 %v67
  %v183 = vpop.f32.mrf.mxu0
  %v184 = vadd.f32 %v55, %v183
  %185 = vmatmul.f32.gmra.mxu0 %v70
  %v186 = vpop.f32.mrf.mxu0
  %v187 = vadd.f32 %v55, %v186
  %188 = vmatmul.f32.gmra.mxu0 %v73
  %v189 = vpop.f32.mrf.mxu0
  %v190 = vadd.f32 %v55, %v189
  %191 = vmatmul.f32.gmra.mxu0 %v76
  %v192 = vpop.f32.mrf.mxu0
  %v193 = vadd.f32 %v55, %v192
  %194 = vmatmul.f32.gmra.mxu0 %v79
  %v195 = vpop.f32.mrf.mxu0
  %v196 = vadd.f32 %v55, %v195
  %197 = vmatmul.f32.gmra.mxu0 %v82
  %v198 = vpop.f32.mrf.mxu0
  %v199 = vadd.f32 %v55, %v198
  %200 = vmatmul.f32.gmra.mxu0 %v85
  %v201 = vpop.f32.mrf.mxu0
  %v202 = vadd.f32 %v55, %v201
  %203 = vmatmul.f32.gmra.mxu0 %v88
  %v204 = vpop.f32.mrf.mxu0
  %v205 = vadd.f32 %v55, %v204
  %206 = vmatmul.f32.gmra.mxu0 %v91
  %v207 = vpop.f32.mrf.mxu0
  %v208 = vadd.f32 %v55, %v207
  %209 = vmatmul.f32.gmra.mxu0 %v94
  %v210 = vpop.f32.mrf.mxu0
  %v211 = vadd.f32 %v55, %v210
  %212 = vmatmul.f32.gmra.mxu0 %v97
  %v213 = vpop.f32.mrf.mxu0
  %v214 = vadd.f32 %v55, %v213
  %215 = vmatmul.f32.gmra.mxu0 %v100
  %v216 = vpop.f32.mrf.mxu0
  %v217 = vadd.f32 %v55, %v216
  %218 = vmatmul.f32.gmra.mxu0 %v103
  %v219 = vpop.f32.mrf.mxu0
  %v220 = vadd.f32 %v55, %v219
  %221 = vmatmul.f32.gmra.mxu0 %v106
  %v222 = vpop.f32.mrf.mxu0
  %v223 = vadd.f32 %v55, %v222
  %224 = vmatmul.f32.gmra.mxu0 %v109
  %v225 = vpop.f32.mrf.mxu0
  %v226 = vadd.f32 %v55, %v225
  %227 = vmatmul.f32.gmra.mxu0 %v112
  %v228 = vpop.f32.mrf.mxu0
  %v229 = vadd.f32 %v55, %v228
  %230 = vmatmul.f32.gmra.mxu0 %v115
  %v231 = vpop.f32.mrf.mxu0
  %v232 = vadd.f32 %v55, %v231
  %233 = vmatmul.f32.gmra.mxu0 %v118
  %v234 = vpop.f32.mrf.mxu0
  %v235 = vadd.f32 %v55, %v234
  %236 = vmatmul.f32.gmra.mxu0 %v121
  %v237 = vpop.f32.mrf.mxu0
  %v238 = vadd.f32 %v55, %v237
  %239 = vmatmul.f32.gmra.mxu0 %v124
  %v240 = vpop.f32.mrf.mxu0
  %v241 = vadd.f32 %v55, %v240
  %242 = vmatmul.f32.gmra.mxu0 %v127
  %v243 = vpop.f32.mrf.mxu0
  %v244 = vadd.f32 %v55, %v243
  %245 = vmatmul.f32.gmra.mxu0 %v130
  %v246 = vpop.f32.mrf.mxu0
  %v247 = vadd.f32 %v55, %v246
  %248 = vmatmul.f32.gmra.mxu0 %v133
  %v249 = vpop.f32.mrf.mxu0
  %v250 = vadd.f32 %v55, %v249
  %251 = vmatmul.f32.gmra.mxu0 %v136
  %v252 = vpop.f32.mrf.mxu0
  %v253 = vadd.f32 %v55, %v252
  %254 = vmatmul.f32.gmra.mxu0 %v139
  %v255 = vpop.f32.mrf.mxu0
  %v256 = vadd.f32 %v55, %v255
  %257 = vmatmul.f32.gmra.mxu0 %v142
  %v258 = vpop.f32.mrf.mxu0
  %v259 = vadd.f32 %v55, %v258
  %260 = vmatmul.f32.gmra.mxu0 %v145
  %v261 = vpop.f32.mrf.mxu0
  %v262 = vadd.f32 %v55, %v261
  %263 = vmatmul.f32.gmra.mxu0 %v148
  %v264 = vpop.f32.mrf.mxu0
  %v265 = vadd.f32 %v55, %v264
  %266 = vmatmul.f32.gmra.mxu0 %v151
  %v267 = vpop.f32.mrf.mxu0
  %v268 = vadd.f32 %v55, %v267
  %269 = vdwg.mxu0
  %v270 = vmax.f32 %v175, 0.0
  %v271 = vmax.f32 %v178, 0.0
  %v272 = vmax.f32 %v181, 0.0
  %v273 = vmax.f32 %v184, 0.0
  %v274 = vmax.f32 %v187, 0.0
  %v275 = vmax.f32 %v190, 0.0
  %v276 = vmax.f32 %v193, 0.0
  %v277 = vmax.f32 %v196, 0.0
  %v278 = vmax.f32 %v199, 0.0
  %v279 = vmax.f32 %v202, 0.0
  %v280 = vmax.f32 %v205, 0.0
  %v281 = vmax.f32 %v208, 0.0
  %v282 = vmax.f32 %v211, 0.0
  %v283 = vmax.f32 %v214, 0.0
  %v284 = vmax.f32 %v217, 0.0
  %v285 = vmax.f32 %v220, 0.0
  %v286 = vmax.f32 %v223, 0.0
  %v287 = vmax.f32 %v226, 0.0
  %v288 = vmax.f32 %v229, 0.0
  %v289 = vmax.f32 %v232, 0.0
  %v290 = vmax.f32 %v235, 0.0
  %v291 = vmax.f32 %v238, 0.0
  %v292 = vmax.f32 %v241, 0.0
  %v293 = vmax.f32 %v244, 0.0
  %v294 = vmax.f32 %v247, 0.0
  %v295 = vmax.f32 %v250, 0.0
  %v296 = vmax.f32 %v253, 0.0
  %v297 = vmax.f32 %v256, 0.0
  %v298 = vmax.f32 %v259, 0.0
  %v299 = vmax.f32 %v262, 0.0
  %v300 = vmax.f32 %v265, 0.0
  %v301 = vmax.f32 %v268, 0.0
  %v302 = vld [vmem:[%s2] sm:$0xff]
  %v303 = vld [vmem:[%s2 + $0x8] sm:$0xff]
  %v304 = vld [vmem:[%s2 + $0x10] sm:$0xff]
  %v305 = vld [vmem:[%s2 + $0x18] sm:$0xff]
  %v306 = vld [vmem:[%s2 + $0x20] sm:$0xff]
  %v307 = vld [vmem:[%s2 + $0x28] sm:$0xff]
  %v308 = vld [vmem:[%s2 + $0x30] sm:$0xff]
  %v309 = vld [vmem:[%s2 + $0x38] sm:$0xff]
  %v310 = vld [vmem:[%s2 + $0x40] sm:$0xff]
  %v311 = vld [vmem:[%s2 + $0x48] sm:$0xff]
  %v312 = vld [vmem:[%s2 + $0x50] sm:$0xff]
  %v313 = vld [vmem:[%s2 + $0x58] sm:$0xff]
  %v314 = vld [vmem:[%s2 + $0x60] sm:$0xff]
  %v315 = vld [vmem:[%s2 + $0x68] sm:$0xff]
  %v316 = vld [vmem:[%s2 + $0x70] sm:$0xff]
  %v317 = vld [vmem:[%s2 + $0x78] sm:$0xff]
  %v318 = vld [vmem:[%s4 + $0x1] sm:$0x1]
  %v319 = vperm.slane %v318, 0
  %320 = vmatpush.msra.mxu0 %v317
  %321 = vmatpush.msra.mxu0 %v316
  %322 = vmatpush.msra.mxu0 %v315
  %323 = vmatpush.msra.mxu0 %v314
  %324 = vmatpush.msra.mxu0 %v313
  %325 = vmatpush.msra.mxu0 %v312
  %326 = vmatpush.msra.mxu0 %v311
  %327 = vmatpush.msra.mxu0 %v310
  %328 = vmatpush.msra.mxu0 %v309
  %329 = vmatpush.msra.mxu0 %v308
  %330 = vmatpush.msra.mxu0 %v307
  %331 = vmatpush.msra.mxu0 %v306
  %332 = vmatpush.msra.mxu0 %v305
  %333 = vmatpush.msra.mxu0 %v304
  %334 = vmatpush.msra.mxu0 %v303
  %335 = vmatpush.msra.mxu0 %v302
  %336 = vmatmul.f32.gmra.mxu0 %v270
  %v337 = vpop.f32.mrf.mxu0
  %v338 = vadd.f32 %v319, %v337
  %339 = vmatmul.f32.gmra.mxu0 %v271
  %v340 = vpop.f32.mrf.mxu0
  %v341 = vadd.f32 %v319, %v340
  %342 = vmatmul.f32.gmra.mxu0 %v272
  %v343 = vpop.f32.mrf.mxu0
  %v344 = vadd.f32 %v319, %v343
  %345 = vmatmul.f32.gmra.mxu0 %v273
  %v346 = vpop.f32.mrf.mxu0
  %v347 = vadd.f32 %v319, %v346
  %348 = vmatmul.f32.gmra.mxu0 %v274
  %v349 = vpop.f32.mrf.mxu0
  %v350 = vadd.f32 %v319, %v349
  %351 = vmatmul.f32.gmra.mxu0 %v275
  %v352 = vpop.f32.mrf.mxu0
  %v353 = vadd.f32 %v319, %v352
  %354 = vmatmul.f32.gmra.mxu0 %v276
  %v355 = vpop.f32.mrf.mxu0
  %v356 = vadd.f32 %v319, %v355
  %357 = vmatmul.f32.gmra.mxu0 %v277
  %v358 = vpop.f32.mrf.mxu0
  %v359 = vadd.f32 %v319, %v358
  %360 = vmatmul.f32.gmra.mxu0 %v278
  %v361 = vpop.f32.mrf.mxu0
  %v362 = vadd.f32 %v319, %v361
  %363 = vmatmul.f32.gmra.mxu0 %v279
  %v364 = vpop.f32.mrf.mxu0
  %v365 = vadd.f32 %v319, %v364
  %366 = vmatmul.f32.gmra.mxu0 %v280
  %v367 = vpop.f32.mrf.mxu0
  %v368 = vadd.f32 %v319, %v367
  %369 = vmatmul.f32.gmra.mxu0 %v281
  %v370 = vpop.f32.mrf.mxu0
  %v371 = vadd.f32 %v319, %v370
  %372 = vmatmul.f32.gmra.mxu0 %v282
  %v373 = vpop.f32.mrf.mxu0
  %v374 = vadd.f32 %v319, %v373
  %375 = vmatmul.f32.gmra.mxu0 %v283
  %v376 = vpop.f32.mrf.mxu0
  %v377 = vadd.f32 %v319, %v376
  %378 = vmatmul.f32.gmra.mxu0 %v284
  %v379 = vpop.f32.mrf.mxu0
  %v380 = vadd.f32 %v319, %v379
  %381 = vmatmul.f32.gmra.mxu0 %v285
  %v382 = vpop.f32.mrf.mxu0
  %v383 = vadd.f32 %v319, %v382
  %384 = vmatmul.f32.gmra.mxu0 %v286
  %v385 = vpop.f32.mrf.mxu0
  %v386 = vadd.f32 %v319, %v385
  %387 = vmatmul.f32.gmra.mxu0 %v287
  %v388 = vpop.f32.mrf.mxu0
  %v389 = vadd.f32 %v319, %v388
  %390 = vmatmul.f32.gmra.mxu0 %v288
  %v391 = vpop.f32.mrf.mxu0
  %v392 = vadd.f32 %v319, %v391
  %393 = vmatmul.f32.gmra.mxu0 %v289
  %v394 = vpop.f32.mrf.mxu0
  %v395 = vadd.f32 %v319, %v394
  %396 = vmatmul.f32.gmra.mxu0 %v290
  %v397 = vpop.f32.mrf.mxu0
  %v398 = vadd.f32 %v319, %v397
  %399 = vmatmul.f32.gmra.mxu0 %v291
  %v400 = vpop.f32.mrf.mxu0
  %v401 = vadd.f32 %v319, %v400
  %402 = vmatmul.f32.gmra.mxu0 %v292
  %v403 = vpop.f32.mrf.mxu0
  %v404 = vadd.f32 %v319, %v403
  %405 = vmatmul.f32.gmra.mxu0 %v293
  %v406 = vpop.f32.mrf.mxu0
  %v407 = vadd.f32 %v319, %v406
  %408 = vmatmul.f32.gmra.mxu0 %v294
  %v409 = vpop.f32.mrf.mxu0
  %v410 = vadd.f32 %v319, %v409
  %411 = vmatmul.f32.gmra.mxu0 %v295
  %v412 = vpop.f32.mrf.mxu0
  %v413 = vadd.f32 %v319, %v412
  %414 = vmatmul.f32.gmra.mxu0 %v296
  %v415 = vpop.f32.mrf.mxu0
  %v416 = vadd.f32 %v319, %v415
  %417 = vmatmul.f32.gmra.mxu0 %v297
  %v418 = vpop.f32.mrf.mxu0
  %v419 = vadd.f32 %v319, %v418
  %420 = vmatmul.f32.gmra.mxu0 %v298
  %v421 = vpop.f32.mrf.mxu0
  %v422 = vadd.f32 %v319, %v421
  %423 = vmatmul.f32.gmra.mxu0 %v299
  %v424 = vpop.f32.mrf.mxu0
  %v425 = vadd.f32 %v319, %v424
  %426 = vmatmul.f32.gmra.mxu0 %v300
  %v427 = vpop.f32.mrf.mxu0
  %v428 = vadd.f32 %v319, %v427
  %429 = vmatmul.f32.gmra.mxu0 %v301
  %v430 = vpop.f32.mrf.mxu0
  %v431 = vadd.f32 %v319, %v430
  %432 = vdwg.mxu0
  %v433 = vmax.f32 %v338, 0.0
  %v434 = vmax.f32 %v341, 0.0
  %v435 = vmax.f32 %v344, 0.0
  %v436 = vmax.f32 %v347, 0.0
  %v437 = vmax.f32 %v350, 0.0
  %v438 = vmax.f32 %v353, 0.0
  %v439 = vmax.f32 %v356, 0.0
  %v440 = vmax.f32 %v359, 0.0
  %v441 = vmax.f32 %v362, 0.0
  %v442 = vmax.f32 %v365, 0.0
  %v443 = vmax.f32 %v368, 0.0
  %v444 = vmax.f32 %v371, 0.0
  %v445 = vmax.f32 %v374, 0.0
  %v446 = vmax.f32 %v377, 0.0
  %v447 = vmax.f32 %v380, 0.0
  %v448 = vmax.f32 %v383, 0.0
  %v449 = vmax.f32 %v386, 0.0
  %v450 = vmax.f32 %v389, 0.0
  %v451 = vmax.f32 %v392, 0.0
  %v452 = vmax.f32 %v395, 0.0
  %v453 = vmax.f32 %v398, 0.0
  %v454 = vmax.f32 %v401, 0.0
  %v455 = vmax.f32 %v404, 0.0
  %v456 = vmax.f32 %v407, 0.0
  %v457 = vmax.f32 %v410, 0.0
  %v458 = vmax.f32 %v413, 0.0
  %v459 = vmax.f32 %v416, 0.0
  %v460 = vmax.f32 %v419, 0.0
  %v461 = vmax.f32 %v422, 0.0
  %v462 = vmax.f32 %v425, 0.0
  %v463 = vmax.f32 %v428, 0.0
  %v464 = vmax.f32 %v431, 0.0
  %v465 = vld [vmem:[%s3] sm:$0xff]
  %v466 = vld [vmem:[%s3 + $0x8] sm:$0xff]
  %v467 = vld [vmem:[%s3 + $0x10] sm:$0xff]
  %v468 = vld [vmem:[%s3 + $0x18] sm:$0xff]
  %v469 = vld [vmem:[%s3 + $0x20] sm:$0xff]
  %v470 = vld [vmem:[%s3 + $0x28] sm:$0xff]
  %v471 = vld [vmem:[%s3 + $0x30] sm:$0xff]
  %v472 = vld [vmem:[%s3 + $0x38] sm:$0xff]
  %v473 = vld [vmem:[%s3 + $0x40] sm:$0xff]
  %v474 = vld [vmem:[%s3 + $0x48] sm:$0xff]
  %v475 = vld [vmem:[%s3 + $0x50] sm:$0xff]
  %v476 = vld [vmem:[%s3 + $0x58] sm:$0xff]
  %v477 = vld [vmem:[%s3 + $0x60] sm:$0xff]
  %v478 = vld [vmem:[%s3 + $0x68] sm:$0xff]
  %v479 = vld [vmem:[%s3 + $0x70] sm:$0xff]
  %v480 = vld [vmem:[%s3 + $0x78] sm:$0xff]
  %v481 = vld [vmem:[%s4 + $0x2] sm:$0x1]
  %v482 = vperm.slane %v481, 0
  %483 = vmatpush.msra.mxu0 %v480
  %484 = vmatpush.msra.mxu0 %v479
  %485 = vmatpush.msra.mxu0 %v478
  %486 = vmatpush.msra.mxu0 %v477
  %487 = vmatpush.msra.mxu0 %v476
  %488 = vmatpush.msra.mxu0 %v475
  %489 = vmatpush.msra.mxu0 %v474
  %490 = vmatpush.msra.mxu0 %v473
  %491 = vmatpush.msra.mxu0 %v472
  %492 = vmatpush.msra.mxu0 %v471
  %493 = vmatpush.msra.mxu0 %v470
  %494 = vmatpush.msra.mxu0 %v469
  %495 = vmatpush.msra.mxu0 %v468
  %496 = vmatpush.msra.mxu0 %v467
  %497 = vmatpush.msra.mxu0 %v466
  %498 = vmatpush.msra.mxu0 %v465
  %499 = vmatmul.f32.gmra.mxu0 %v433
  %v500 = vpop.f32.mrf.mxu0
  %v501 = vadd.f32 %v482, %v500
  %502 = vmatmul.f32.gmra.mxu0 %v434
  %v503 = vpop.f32.mrf.mxu0
  %v504 = vadd.f32 %v482, %v503
  %505 = vmatmul.f32.gmra.mxu0 %v435
  %v506 = vpop.f32.mrf.mxu0
  %v507 = vadd.f32 %v482, %v506
  %508 = vmatmul.f32.gmra.mxu0 %v436
  %v509 = vpop.f32.mrf.mxu0
  %v510 = vadd.f32 %v482, %v509
  %511 = vmatmul.f32.gmra.mxu0 %v437
  %v512 = vpop.f32.mrf.mxu0
  %v513 = vadd.f32 %v482, %v512
  %514 = vmatmul.f32.gmra.mxu0 %v438
  %v515 = vpop.f32.mrf.mxu0
  %v516 = vadd.f32 %v482, %v515
  %517 = vmatmul.f32.gmra.mxu0 %v439
  %v518 = vpop.f32.mrf.mxu0
  %v519 = vadd.f32 %v482, %v518
  %520 = vmatmul.f32.gmra.mxu0 %v440
  %v521 = vpop.f32.mrf.mxu0
  %v522 = vadd.f32 %v482, %v521
  %523 = vmatmul.f32.gmra.mxu0 %v441
  %v524 = vpop.f32.mrf.mxu0
  %v525 = vadd.f32 %v482, %v524
  %526 = vmatmul.f32.gmra.mxu0 %v442
  %v527 = vpop.f32.mrf.mxu0
  %v528 = vadd.f32 %v482, %v527
  %529 = vmatmul.f32.gmra.mxu0 %v443
  %v530 = vpop.f32.mrf.mxu0
  %v531 = vadd.f32 %v482, %v530
  %532 = vmatmul.f32.gmra.mxu0 %v444
  %v533 = vpop.f32.mrf.mxu0
  %v534 = vadd.f32 %v482, %v533
  %535 = vmatmul.f32.gmra.mxu0 %v445
  %v536 = vpop.f32.mrf.mxu0
  %v537 = vadd.f32 %v482, %v536
  %538 = vmatmul.f32.gmra.mxu0 %v446
  %v539 = vpop.f32.mrf.mxu0
  %v540 = vadd.f32 %v482, %v539
  %541 = vmatmul.f32.gmra.mxu0 %v447
  %v542 = vpop.f32.mrf.mxu0
  %v543 = vadd.f32 %v482, %v542
  %544 = vmatmul.f32.gmra.mxu0 %v448
  %v545 = vpop.f32.mrf.mxu0
  %v546 = vadd.f32 %v482, %v545
  %547 = vmatmul.f32.gmra.mxu0 %v449
  %v548 = vpop.f32.mrf.mxu0
  %v549 = vadd.f32 %v482, %v548
  %550 = vmatmul.f32.gmra.mxu0 %v450
  %v551 = vpop.f32.mrf.mxu0
  %v552 = vadd.f32 %v482, %v551
  %553 = vmatmul.f32.gmra.mxu0 %v451
  %v554 = vpop.f32.mrf.mxu0
  %v555 = vadd.f32 %v482, %v554
  %556 = vmatmul.f32.gmra.mxu0 %v452
  %v557 = vpop.f32.mrf.mxu0
  %v558 = vadd.f32 %v482, %v557
  %559 = vmatmul.f32.gmra.mxu0 %v453
  %v560 = vpop.f32.mrf.mxu0
  %v561 = vadd.f32 %v482, %v560
  %562 = vmatmul.f32.gmra.mxu0 %v454
  %v563 = vpop.f32.mrf.mxu0
  %v564 = vadd.f32 %v482, %v563
  %565 = vmatmul.f32.gmra.mxu0 %v455
  %v566 = vpop.f32.mrf.mxu0
  %v567 = vadd.f32 %v482, %v566
  %568 = vmatmul.f32.gmra.mxu0 %v456
  %v569 = vpop.f32.mrf.mxu0
  %v570 = vadd.f32 %v482, %v569
  %571 = vmatmul.f32.gmra.mxu0 %v457
  %v572 = vpop.f32.mrf.mxu0
  %v573 = vadd.f32 %v482, %v572
  %574 = vmatmul.f32.gmra.mxu0 %v458
  %v575 = vpop.f32.mrf.mxu0
  %v576 = vadd.f32 %v482, %v575
  %577 = vmatmul.f32.gmra.mxu0 %v459
  %v578 = vpop.f32.mrf.mxu0
  %v579 = vadd.f32 %v482, %v578
  %580 = vmatmul.f32.gmra.mxu0 %v460
  %v581 = vpop.f32.mrf.mxu0
  %v582 = vadd.f32 %v482, %v581
  %583 = vmatmul.f32.gmra.mxu0 %v461
  %v584 = vpop.f32.mrf.mxu0
  %v585 = vadd.f32 %v482, %v584
  %586 = vmatmul.f32.gmra.mxu0 %v462
  %v587 = vpop.f32.mrf.mxu0
  %v588 = vadd.f32 %v482, %v587
  %589 = vmatmul.f32.gmra.mxu0 %v463
  %v590 = vpop.f32.mrf.mxu0
  %v591 = vadd.f32 %v482, %v590
  %592 = vmatmul.f32.gmra.mxu0 %v464
  %v593 = vpop.f32.mrf.mxu0
  %v594 = vadd.f32 %v482, %v593
  %595 = vdwg.mxu0
  %vm596 = vcmask 23552
  %597 = vst.msk [vmem:[%s5] sm:$0xff] %vm596, %v501
  %598 = vst.msk [vmem:[%s5 + $0x8] sm:$0xff] %vm596, %v504
  %599 = vst.msk [vmem:[%s5 + $0x10] sm:$0xff] %vm596, %v507
  %600 = vst.msk [vmem:[%s5 + $0x18] sm:$0xff] %vm596, %v510
  %601 = vst.msk [vmem:[%s5 + $0x20] sm:$0xff] %vm596, %v513
  %602 = vst.msk [vmem:[%s5 + $0x28] sm:$0xff] %vm596, %v516
  %603 = vst.msk [vmem:[%s5 + $0x30] sm:$0xff] %vm596, %v519
  %604 = vst.msk [vmem:[%s5 + $0x38] sm:$0xff] %vm596, %v522
  %605 = vst.msk [vmem:[%s5 + $0x40] sm:$0xff] %vm596, %v525
  %606 = vst.msk [vmem:[%s5 + $0x48] sm:$0xff] %vm596, %v528
  %607 = vst.msk [vmem:[%s5 + $0x50] sm:$0xff] %vm596, %v531
  %608 = vst.msk [vmem:[%s5 + $0x58] sm:$0xff] %vm596, %v534
  %609 = vst.msk [vmem:[%s5 + $0x60] sm:$0xff] %vm596, %v537
  %610 = vst.msk [vmem:[%s5 + $0x68] sm:$0xff] %vm596, %v540
  %611 = vst.msk [vmem:[%s5 + $0x70] sm:$0xff] %vm596, %v543
  %612 = vst.msk [vmem:[%s5 + $0x78] sm:$0xff] %vm596, %v546
  %613 = vst.msk [vmem:[%s5 + $0x80] sm:$0xff] %vm596, %v549
  %614 = vst.msk [vmem:[%s5 + $0x88] sm:$0xff] %vm596, %v552
  %615 = vst.msk [vmem:[%s5 + $0x90] sm:$0xff] %vm596, %v555
  %616 = vst.msk [vmem:[%s5 + $0x98] sm:$0xff] %vm596, %v558
  %617 = vst.msk [vmem:[%s5 + $0xa0] sm:$0xff] %vm596, %v561
  %618 = vst.msk [vmem:[%s5 + $0xa8] sm:$0xff] %vm596, %v564
  %619 = vst.msk [vmem:[%s5 + $0xb0] sm:$0xff] %vm596, %v567
  %620 = vst.msk [vmem:[%s5 + $0xb8] sm:$0xff] %vm596, %v570
  %621 = vst.msk [vmem:[%s5 + $0xc0] sm:$0xff] %vm596, %v573
  %622 = vst.msk [vmem:[%s5 + $0xc8] sm:$0xff] %vm596, %v576
  %623 = vst.msk [vmem:[%s5 + $0xd0] sm:$0xff] %vm596, %v579
  %624 = vst.msk [vmem:[%s5 + $0xd8] sm:$0xff] %vm596, %v582
  %625 = vst.msk [vmem:[%s5 + $0xe0] sm:$0xff] %vm596, %v585
  %626 = vst.msk [vmem:[%s5 + $0xe8] sm:$0xff] %vm596, %v588
  %627 = vst.msk [vmem:[%s5 + $0xf0] sm:$0xff] %vm596, %v591
  %628 = vst.msk [vmem:[%s5 + $0xf8] sm:$0xff] %vm596, %v594
  // Predicated region
  $region22: #{_dqn_forward_impl.1} parent=0 // pred_check
    _
  $region23: #{_dqn_forward_impl.1} parent=0 // pred_check_branch
    %630 = sbr.rel (0) target = $region25
  $region24: #{_dqn_forward_impl.1} parent=0 // pred_region
    _
  $region25: #{_dqn_forward_impl.1} parent=0 // pred_fallthru
    _
  // Predicated region
  $region26: #{_dqn_forward_impl.1} parent=0 // pred_check
    _
  $region27: #{_dqn_forward_impl.1} parent=0 // pred_check_branch
    %632 = sbr.rel (0) target = $region29
  $region28: #{_dqn_forward_impl.1} parent=0 // pred_region
    _
  $region29: #{_dqn_forward_impl.1} parent=0 // pred_fallthru
    _

</llo_original>
